<compile_context>
chip_gen: v5e
topology: v5e:2x2
jax: 0.10.0
libtpu: 0.0.40
codegen_flags: <defaults>
</compile_context>

<pallas_src>
import functools

import jax
import jax.numpy as jnp
from jax import lax
from jax.experimental import pallas as pl
from jax.experimental.pallas import tpu as pltpu


def _patch_merging_kernel(x_ref, we_ref, wo_ref, b_ref, o_ref, *, eps, inv_4c):
    # x_ref  : (tb, 2, W2, 2C)  two image rows per strip; dim 1 = row parity.
    #          Per token, the trailing 2C packs [even-col C | odd-col C].
    # we_ref : (2C, 2C)  folded (gamma * W^T) rows for even image rows [x0|x2]
    # wo_ref : (2C, 2C)  folded (gamma * W^T) rows for odd  image rows [x1|x3]
    # b_ref  : (1, 2C)   folded bias (beta @ W^T), f32
    # o_ref  : (tb, W2, 2C)
    tb, _, w2, c2 = x_ref.shape
    n = tb * w2

    x4 = x_ref[...]                        # one contiguous block, both parities
    xe = x4[:, 0].astype(jnp.float32)      # (tb, W2, 2C) even rows: [x0 | x2]
    xo = x4[:, 1].astype(jnp.float32)      # (tb, W2, 2C) odd  rows: [x1 | x3]

    # Fused LayerNorm statistics over the full 4C feature (split across the
    # two parities): one sum + one sum-of-squares pass, compile-time 1/(4C).
    s1 = jnp.sum(xe, axis=-1, keepdims=True) + jnp.sum(xo, axis=-1, keepdims=True)
    s2 = (jnp.sum(xe * xe, axis=-1, keepdims=True)
          + jnp.sum(xo * xo, axis=-1, keepdims=True))
    mean = s1 * inv_4c
    var = jnp.maximum(s2 * inv_4c - mean * mean, 0.0)   # cancellation guard
    rstd = lax.rsqrt(var + eps)

    # gamma/beta are folded into the weights/bias, so only the normalization
    # itself runs on the VPU.  Cast to the weight dtype (bf16 by default ->
    # native MXU fast path); accumulate in f32.
    ye = ((xe - mean) * rstd).astype(we_ref.dtype).reshape(n, c2)
    yo = ((xo - mean) * rstd).astype(wo_ref.dtype).reshape(n, c2)

    acc = jnp.dot(ye, we_ref[...], preferred_element_type=jnp.float32)
    acc = acc + jnp.dot(yo, wo_ref[...], preferred_element_type=jnp.float32)
    acc = acc + b_ref[...]
    o_ref[...] = acc.reshape(tb, w2, c2).astype(o_ref.dtype)


def _largest_divisor_leq(n, cap):
    cap = max(1, min(int(cap), int(n)))
    for d in range(cap, 0, -1):
        if n % d == 0:
            return d
    return 1


def _vmem_capacity_bytes():
    try:
        info = pltpu.get_tpu_info()
        cap = int(getattr(info, "vmem_capacity_bytes", 0))
        if cap > 0:
            return cap
    except Exception:
        pass
    return 64 * 2 ** 20   # v7x-safe default


def patch_merging(x, input_resolution, gamma, beta, w_reduction, *,
                  eps=1e-5, target_tokens=1024, param_dtype=jnp.bfloat16):
    """Pallas implementation of PatchMerging.forward.

    x            : (B, H*W, C)
    gamma, beta  : (4C,)      LayerNorm affine params
    w_reduction  : (2C, 4C)   nn.Linear weight (out, in), no bias
    param_dtype  : dtype for the folded reduction weight (default bf16 ->
                   native MXU fast path; pass jnp.float32 for tight parity).
    returns      : (B, (H/2)*(W/2), 2C)
    """
    H, W = input_resolution
    B, L, C = x.shape
    assert L == H * W, "input feature has wrong size"
    assert H % 2 == 0 and W % 2 == 0, f"x size ({H}*{W}) are not even."
    H2, W2 = H // 2, W // 2
    R = B * H2            # number of 2-row image strips (grid rows)
    M = R * W2            # merged output tokens
    C2, C4 = 2 * C, 4 * C
    out_dtype = x.dtype

    # --- metadata-only view: (B, H*W, C) -> (B*H/2, 2, W/2, 2C) --------------
    # dim 1 selects even (0) / odd (1) image rows; the trailing 2C packs the
    # (even-col, odd-col) channel pair of one output token contiguously.
    x_view = x.reshape(R, 2, W2, C2)

    # --- fold LayerNorm affine into the reduction weight ----------------------
    #   out = ((x - mu) * rstd * gamma + beta) @ W^T
    #       = ((x - mu) * rstd) @ (gamma[:, None] * W^T) + beta @ W^T
    w_t = w_reduction.astype(jnp.float32).T                      # (4C, 2C)
    w_eff = gamma.astype(jnp.float32)[:, None] * w_t             # (4C, 2C)
    bias_eff = (beta.astype(jnp.float32) @ w_t).reshape(1, C2)   # (1, 2C), f32

    # Reference feature order is [x0|x1|x2|x3]; the even-row slab carries
    # [x0|x2] and the odd-row slab [x1|x3] -> permute folded weight rows.
    w_even = jnp.concatenate([w_eff[0:C], w_eff[2 * C:3 * C]], axis=0)  # (2C, 2C)
    w_odd = jnp.concatenate([w_eff[C:2 * C], w_eff[3 * C:4 * C]], axis=0)
    if param_dtype is not None:
        w_even = w_even.astype(param_dtype)
        w_odd = w_odd.astype(param_dtype)

    x_item = jnp.dtype(x.dtype).itemsize
    o_item = jnp.dtype(out_dtype).itemsize
    w_item = jnp.dtype(w_even.dtype).itemsize

    # --- tile picker (generation / megacore / VMEM aware) ---------------------
    vmem_cap = _vmem_capacity_bytes()
    # Pipeline budget: generous on 128 MiB parts (v5e/v6e), tighter on 64 MiB v7x.
    pipe_budget = 48 * 2 ** 20 if vmem_cap >= 100 * 2 ** 20 else 24 * 2 ** 20
    # Per-token bytes: double-buffered in/out blocks + in-kernel f32 temporaries.
    bytes_per_token = (2 * C4 * x_item       # input block, double-buffered
                       + 2 * C2 * o_item     # output block, double-buffered
                       + 8 * C4              # xe/xo f32 working copies
                       + C4 * w_item         # ye/yo matmul operands
                       + 4 * C2              # f32 accumulator
                       + 4 * C4)             # relayout / misc scratch headroom
    w_bytes = 2 * 2 * C2 * C2 * w_item + 4 * C2
    tb_vmem_cap = max(1, (pipe_budget - w_bytes) // max(1, W2 * bytes_per_token))
    tb_target = max(1, target_tokens // max(1, W2))
    tb_grid_cap = R // 2 if R >= 2 else 1    # keep >= 2 grid steps (v7x megacore)
    tb = _largest_divisor_leq(R, min(tb_target, tb_vmem_cap, tb_grid_cap))
    grid = (R // tb,)

    # Explicit VMEM limit: 1.5x the estimated working set, floored at the 32 MiB
    # scoped default and capped well below physical capacity so Mosaic keeps
    # internal-scratch headroom (v7x only has 64 MiB).
    est = w_bytes + tb * W2 * bytes_per_token
    vmem_limit = int(min(int(vmem_cap * 0.82), max(32 * 2 ** 20, int(1.5 * est))))

    kernel = functools.partial(_patch_merging_kernel,
                               eps=float(eps), inv_4c=1.0 / float(C4))

    cost = pl.CostEstimate(
        flops=int(2 * M * C4 * C2 + 10 * M * C4),
        transcendentals=int(M),
        bytes_accessed=int(M * C4 * x_item + M * C2 * o_item
                           + 2 * C2 * C2 * w_item + 4 * C2),
    )

    def _call(const_pipeline_mode):
        ck = ({} if const_pipeline_mode is None
              else dict(pipeline_mode=const_pipeline_mode))
        in_specs = [
            # both row parities of tb strips in one contiguous block
            pl.BlockSpec((tb, 2, W2, C2), lambda i: (i, 0, 0, 0)),
            pl.BlockSpec((C2, C2), lambda i: (0, 0), **ck),
            pl.BlockSpec((C2, C2), lambda i: (0, 0), **ck),
            pl.BlockSpec((1, C2), lambda i: (0, 0), **ck),
        ]
        # 3-D output block: last two dims equal the full array extents -> always
        # legal regardless of tb / W2; wrapper does the final contiguous reshape.
        out_specs = pl.BlockSpec((tb, W2, C2), lambda i: (i, 0, 0))
        return pl.pallas_call(
            kernel,
            out_shape=jax.ShapeDtypeStruct((R, W2, C2), out_dtype),
            grid_spec=pltpu.PrefetchScalarGridSpec(
                num_scalar_prefetch=0,
                grid=grid,
                in_specs=in_specs,
                out_specs=out_specs,
            ),
            compiler_params=pltpu.CompilerParams(
                dimension_semantics=("parallel",),
                vmem_limit_bytes=vmem_limit,
            ),
            cost_estimate=cost,
        )(x_view, w_even, w_odd, bias_eff)

    if hasattr(pl, "Buffered"):
        try:
            # Constant-index weight/bias tiles do not need double buffering.
            out = _call(pl.Buffered(1))
        except (TypeError, ValueError, NotImplementedError):
            out = _call(None)
    else:
        out = _call(None)

    return out.reshape(B, H2 * W2, C2)


def _reference(x, input_resolution, gamma, beta, w_reduction, eps=1e-5):
    H, W = input_resolution
    B, L, C = x.shape
    xg = x.reshape(B, H, W, C)
    x0 = xg[:, 0::2, 0::2, :]
    x1 = xg[:, 1::2, 0::2, :]
    x2 = xg[:, 0::2, 1::2, :]
    x3 = xg[:, 1::2, 1::2, :]
    xm = jnp.concatenate([x0, x1, x2, x3], axis=-1).reshape(B, -1, 4 * C)
    mean = jnp.mean(xm, axis=-1, keepdims=True)
    var = jnp.mean((xm - mean) ** 2, axis=-1, keepdims=True)
    xn = (xm - mean) / jnp.sqrt(var + eps) * gamma + beta
    return xn @ w_reduction.T


if __name__ == "__main__":
    # Small shapes consistent with the module: dim=32, H=W=16, B=2.
    B, H, W, dim = 2, 16, 16, 32
    key = jax.random.PRNGKey(0)
    kx, kg, kb, kw = jax.random.split(key, 4)

    x = jax.random.normal(kx, (B, H * W, dim), dtype=jnp.float32)
    gamma = jnp.ones((4 * dim,), jnp.float32) + 0.01 * jax.random.normal(kg, (4 * dim,))
    beta = 0.01 * jax.random.normal(kb, (4 * dim,))
    w_reduction = 0.02 * jax.random.normal(kw, (2 * dim, 4 * dim), dtype=jnp.float32)

    ref = _reference(x, (H, W), gamma, beta, w_reduction)

    # f32 parameter path (tight parity with the PyTorch-equivalent reference).
    out_f32 = patch_merging(x, (H, W), gamma, beta, w_reduction,
                            param_dtype=jnp.float32)
    out_f32 = jax.block_until_ready(out_f32)
    assert out_f32.shape == (B, (H // 2) * (W // 2), 2 * dim)
    err = float(jnp.max(jnp.abs(out_f32 - ref)))
    assert err < 2e-4, err

    # Default path: bf16 matmul operands (native MXU fast path), f32 accumulate.
    out_bf16 = patch_merging(x, (H, W), gamma, beta, w_reduction)
    out_bf16 = jax.block_until_ready(out_bf16)
    err_bf16 = float(jnp.max(jnp.abs(out_bf16 - ref)))
    assert err_bf16 < 2e-2, err_bf16

    print("KERNEL_OK")
</pallas_src>

<mosaic_0001>
module attributes {stable_mosaic.version = 11 : i64} {
  func.func @_patch_merging_kernel(%arg0: i32, %arg1: memref<8x2x8x64xf32, #tpu.memory_space<vmem>>, %arg2: memref<64x64xf32, #tpu.memory_space<vmem>>, %arg3: memref<64x64xf32, #tpu.memory_space<vmem>>, %arg4: memref<1x64xf32, #tpu.memory_space<vmem>>, %arg5: memref<8x8x64xf32, #tpu.memory_space<vmem>>) attributes {dimension_semantics = [#tpu.dimension_semantics<parallel>], iteration_bounds = array<i64: 2>, scalar_prefetch = 0 : i64, scratch_operands = 0 : i64, tpu.core_type = #tpu.core_type<tc>, window_params = [{transform_indices = @transform_0, window_bounds = array<i64: 8, 2, 8, 64>}, {pipeline_mode = #tpu.pipeline_mode<synchronous>, transform_indices = @transform_1, window_bounds = array<i64: 64, 64>}, {pipeline_mode = #tpu.pipeline_mode<synchronous>, transform_indices = @transform_2, window_bounds = array<i64: 64, 64>}, {pipeline_mode = #tpu.pipeline_mode<synchronous>, transform_indices = @transform_3, window_bounds = array<i64: 1, 64>}, {transform_indices = @transform_4, window_bounds = array<i64: 8, 8, 64>}]} {
    %c0 = arith.constant 0 : index
    %c0_0 = arith.constant 0 : index
    %c0_1 = arith.constant 0 : index
    %c0_2 = arith.constant 0 : index
    %0 = vector.load %arg1[%c0, %c0_0, %c0_1, %c0_2] : memref<8x2x8x64xf32, #tpu.memory_space<vmem>>, vector<8x2x8x64xf32>
    %1 = vector.extract_strided_slice %0 {offsets = [0, 0, 0, 0], sizes = [8, 1, 8, 64], strides = [1, 1, 1, 1]} : vector<8x2x8x64xf32> to vector<8x1x8x64xf32>
    %2 = vector.shape_cast %1 : vector<8x1x8x64xf32> to vector<8x8x64xf32>
    %3 = vector.extract_strided_slice %0 {offsets = [0, 1, 0, 0], sizes = [8, 1, 8, 64], strides = [1, 1, 1, 1]} : vector<8x2x8x64xf32> to vector<8x1x8x64xf32>
    %4 = vector.shape_cast %3 : vector<8x1x8x64xf32> to vector<8x8x64xf32>
    %cst = arith.constant dense<0.000000e+00> : vector<8x8xf32>
    %5 = vector.multi_reduction <add>, %2, %cst [2] : vector<8x8x64xf32> to vector<8x8xf32>
    %6 = vector.shape_cast %5 : vector<8x8xf32> to vector<8x8x1xf32>
    %cst_3 = arith.constant dense<0.000000e+00> : vector<8x8xf32>
    %7 = vector.multi_reduction <add>, %4, %cst_3 [2] : vector<8x8x64xf32> to vector<8x8xf32>
    %8 = vector.shape_cast %7 : vector<8x8xf32> to vector<8x8x1xf32>
    %9 = arith.addf %6, %8 : vector<8x8x1xf32>
    %10 = arith.mulf %2, %2 : vector<8x8x64xf32>
    %cst_4 = arith.constant dense<0.000000e+00> : vector<8x8xf32>
    %11 = vector.multi_reduction <add>, %10, %cst_4 [2] : vector<8x8x64xf32> to vector<8x8xf32>
    %12 = vector.shape_cast %11 : vector<8x8xf32> to vector<8x8x1xf32>
    %13 = arith.mulf %4, %4 : vector<8x8x64xf32>
    %cst_5 = arith.constant dense<0.000000e+00> : vector<8x8xf32>
    %14 = vector.multi_reduction <add>, %13, %cst_5 [2] : vector<8x8x64xf32> to vector<8x8xf32>
    %15 = vector.shape_cast %14 : vector<8x8xf32> to vector<8x8x1xf32>
    %16 = arith.addf %12, %15 : vector<8x8x1xf32>
    %cst_6 = arith.constant 7.812500e-03 : f32
    %17 = vector.broadcast %cst_6 : f32 to vector<8x8x1xf32>
    %18 = arith.mulf %9, %17 : vector<8x8x1xf32>
    %cst_7 = arith.constant 7.812500e-03 : f32
    %19 = vector.broadcast %cst_7 : f32 to vector<8x8x1xf32>
    %20 = arith.mulf %16, %19 : vector<8x8x1xf32>
    %21 = arith.mulf %18, %18 : vector<8x8x1xf32>
    %22 = arith.subf %20, %21 : vector<8x8x1xf32>
    %cst_8 = arith.constant 0.000000e+00 : f32
    %23 = vector.broadcast %cst_8 : f32 to vector<8x8x1xf32>
    %24 = arith.maximumf %22, %23 : vector<8x8x1xf32>
    %cst_9 = arith.constant 9.99999974E-6 : f32
    %25 = vector.broadcast %cst_9 : f32 to vector<8x8x1xf32>
    %26 = arith.addf %24, %25 : vector<8x8x1xf32>
    %27 = math.rsqrt %26 : vector<8x8x1xf32>
    %28 = vector.broadcast %18 : vector<8x8x1xf32> to vector<8x8x64xf32>
    %29 = arith.subf %2, %28 : vector<8x8x64xf32>
    %30 = vector.broadcast %27 : vector<8x8x1xf32> to vector<8x8x64xf32>
    %31 = arith.mulf %29, %30 : vector<8x8x64xf32>
    %32 = vector.shape_cast %31 : vector<8x8x64xf32> to vector<64x64xf32>
    %33 = vector.broadcast %18 : vector<8x8x1xf32> to vector<8x8x64xf32>
    %34 = arith.subf %4, %33 : vector<8x8x64xf32>
    %35 = vector.broadcast %27 : vector<8x8x1xf32> to vector<8x8x64xf32>
    %36 = arith.mulf %34, %35 : vector<8x8x64xf32>
    %37 = vector.shape_cast %36 : vector<8x8x64xf32> to vector<64x64xf32>
    %c0_10 = arith.constant 0 : index
    %c0_11 = arith.constant 0 : index
    %38 = vector.load %arg2[%c0_10, %c0_11] : memref<64x64xf32, #tpu.memory_space<vmem>>, vector<64x64xf32>
    %cst_12 = arith.constant dense<0.000000e+00> : vector<64x64xf32>
    %39 = tpu.matmul %32, %38, %cst_12 {dimension_numbers = #tpu.dot_dimension_numbers<[1], [0], [0], [1], [0, 0, 1, 1], [], []>} : vector<64x64xf32>, vector<64x64xf32>, vector<64x64xf32> -> vector<64x64xf32>
    %c0_13 = arith.constant 0 : index
    %c0_14 = arith.constant 0 : index
    %40 = vector.load %arg3[%c0_13, %c0_14] : memref<64x64xf32, #tpu.memory_space<vmem>>, vector<64x64xf32>
    %cst_15 = arith.constant dense<0.000000e+00> : vector<64x64xf32>
    %41 = tpu.matmul %37, %40, %cst_15 {dimension_numbers = #tpu.dot_dimension_numbers<[1], [0], [0], [1], [0, 0, 1, 1], [], []>} : vector<64x64xf32>, vector<64x64xf32>, vector<64x64xf32> -> vector<64x64xf32>
    %42 = arith.addf %39, %41 : vector<64x64xf32>
    %c0_16 = arith.constant 0 : index
    %c0_17 = arith.constant 0 : index
    %43 = vector.load %arg4[%c0_16, %c0_17] : memref<1x64xf32, #tpu.memory_space<vmem>>, vector<1x64xf32>
    %44 = vector.broadcast %43 : vector<1x64xf32> to vector<64x64xf32>
    %45 = arith.addf %42, %44 : vector<64x64xf32>
    %46 = vector.shape_cast %45 : vector<64x64xf32> to vector<8x8x64xf32>
    %c0_18 = arith.constant 0 : index
    %c0_19 = arith.constant 0 : index
    %c0_20 = arith.constant 0 : index
    %47 = vector.load %arg5[%c0_18, %c0_19, %c0_20] : memref<8x8x64xf32, #tpu.memory_space<vmem>>, vector<8x8x64xf32>
    tpu.vector_store %arg5[%c0_18, %c0_19, %c0_20], %46 {strides = array<i32>} : memref<8x8x64xf32, #tpu.memory_space<vmem>>, vector<8x8x64xf32>,
    return
  }
  func.func @transform_0(%arg0: i32) -> (i32, i32, i32, i32) {
    %c0_i32 = arith.constant 0 : i32
    %c0_i32_0 = arith.constant 0 : i32
    %c0_i32_1 = arith.constant 0 : i32
    %c0_i32_2 = arith.constant 0 : i32
    return %arg0, %c0_i32, %c0_i32_0, %c0_i32_1 : i32, i32, i32, i32
  }
  func.func @transform_1(%arg0: i32) -> (i32, i32) {
    %c0_i32 = arith.constant 0 : i32
    %c0_i32_0 = arith.constant 0 : i32
    %c0_i32_1 = arith.constant 0 : i32
    return %c0_i32, %c0_i32_0 : i32, i32
  }
  func.func @transform_2(%arg0: i32) -> (i32, i32) {
    %c0_i32 = arith.constant 0 : i32
    %c0_i32_0 = arith.constant 0 : i32
    %c0_i32_1 = arith.constant 0 : i32
    return %c0_i32, %c0_i32_0 : i32, i32
  }
  func.func @transform_3(%arg0: i32) -> (i32, i32) {
    %c0_i32 = arith.constant 0 : i32
    %c0_i32_0 = arith.constant 0 : i32
    %c0_i32_1 = arith.constant 0 : i32
    return %c0_i32, %c0_i32_0 : i32, i32
  }
  func.func @transform_4(%arg0: i32) -> (i32, i32, i32) {
    %c0_i32 = arith.constant 0 : i32
    %c0_i32_0 = arith.constant 0 : i32
    %c0_i32_1 = arith.constant 0 : i32
    return %arg0, %c0_i32, %c0_i32_0 : i32, i32, i32
  }
}

</mosaic_0001>

<llo_original>
// kernel: tpu_custom_call.1
$region0: #{tpu_custom_call.1}
  #allocation0 [shape = 'u32[]', space=smem, size = 0x4, offset = 0x4, fixed_abs, tag = 'smem constant byte address 0x4 - core index']
  #allocation1 [shape = 'u32[72,128]{1,0:T(1,128)}', space=vmem, size = 0x9000, scoped, tag = 'internal scratch']
  %s0 = inlined_call_operand.hbm [shape: f32[16,2,8,64], index: 0, kind: input, shape index: {}]
  %s1 = inlined_call_operand.hbm [shape: f32[64,64], index: 1, kind: input, shape index: {}]
  %s2 = inlined_call_operand.hbm [shape: f32[64,64], index: 2, kind: input, shape index: {}]
  %s3 = inlined_call_operand.vmem [shape: f32[1,64], index: 3, kind: input, shape index: {}]
  %s4 = inlined_call_operand.hbm [shape: f32[16,8,64], index: 4, kind: output, shape index: {}]
  %s5 = sld [smem:[#allocation0]]
  $region61: #{tpu_custom_call.1} parent=0
    _
  %s7 = ssub.s32 1, %s5
  %s8 = scalar_select 0, %s7, %s5
  $region1: #{tpu_custom_call.1} parent=0
    #allocation2 [shape = 'u8[131072]{0}', space=vmem, size = 0x20000, scoped, tag = 'input window, operand 0']
    #allocation3 [shape = 's32[2]{0}', space=sflag, size = 0x8, scoped, tag = 'scoped memory for tpu_custom_call.1']
    #allocation4 [shape = 's32[2]{0}', space=sflag, size = 0x8, scoped, tag = 'scoped memory for tpu_custom_call.1']
    #allocation5 [shape = 'u8[32768]{0}', space=vmem, size = 0x8000, scoped, tag = 'input window, operand 1, single buffered']
    #allocation6 [shape = 's32[1]{0}', space=sflag, size = 0x4, scoped, tag = 'scoped memory for tpu_custom_call.1']
    #allocation7 [shape = 'u8[32768]{0}', space=vmem, size = 0x8000, scoped, tag = 'input window, operand 2, single buffered']
    #allocation8 [shape = 'u8[65536]{0}', space=vmem, size = 0x10000, scoped, tag = 'output window, operand 0']
    %9 = vsyncpa [#allocation3], 0
    %s10 = scalar_lea.sflag [#allocation3], 1
    %11 = vsyncpa %s10, 0
    %12 = vsyncpa [#allocation6], 0
    %13 = vsyncpa [#allocation4], 0
    %s14 = scalar_lea.sflag [#allocation4], 1
    %15 = vsyncpa %s14, 0
    loop: start=0, step=1, limit=4
    $region2: #{tpu_custom_call.1} parent=1 // loop_pre_header
      _
    $region3: #{tpu_custom_call.1} parent=1 // loop_header
      %s17 = sphi 0, %s21
      %p18 = scmp.ge.s32.totalorder %s17, 4
      %s27 = sphi 0, %s29
      %s30 = sphi 0, %s27
      %s31 = sphi 0, %s30
      %s47 = sphi 0, %s31
      %s51 = sphi 0, %s51
      %s53 = sphi 0, %s51
      %s54 = sphi 0, %s53
      %s68 = sphi 0, %s54
      %s72 = sphi 0, %s72
      %s74 = sphi 0, %s72
      %s75 = sphi 0, %s74
      %s89 = sphi 0, %s75
      %s93 = sphi 0, %s93
      %s95 = sphi 0, %s93
      %s96 = sphi 0, %s95
      %s110 = sphi 0, %s96
      %s116 = sphi 0, %s118
      %s119 = sphi 0, %s116
      %s120 = sphi 0, %s119
      %s136 = sphi 0, %s120
    $region4: #{tpu_custom_call.1} parent=1 // loop_header_branch
      %20 = sbr.rel (%p18) target = $region8
    $region5: #{tpu_custom_call.1} parent=1 // loop_body
      %s22 = ssub.s32 %s17, 1
      %s23 = ssub.s32 %s17, 2
      %s24 = sadd.s32 %s17, 1
      %s25 = ssub.s32 %s17, %s24
      %p26 = scmp.eq.s32.totalorder %s25, 0
      %s28 = sadd.s32 %s27, 1
      %s29 = scalar_select %p26, %s27, %s28
      %p32 = pneg %p26
      %p33 = scmp.eq.s32.totalorder %s17, 1
      %p34 = por %p32, %p33
      %p35 = scmp.ne.s32.totalorder %s27, %s30
      %p36 = scmp.eq.s32.totalorder %s17, 0
      %p37 = por %p35, %p36
      %p38 = scmp.ne.s32.totalorder %s27, %s30
      %p39 = scmp.eq.s32.totalorder %s22, 1
      %p40 = por %p38, %p39
      %p41 = scmp.ne.s32.totalorder %s30, %s31
      %p42 = scmp.eq.s32.totalorder %s22, 0
      %p43 = por %p41, %p42
      %p44 = scmp.ne.s32.totalorder %s30, %s31
      %p45 = scmp.eq.s32.totalorder %s23, 1
      %p46 = por %p44, %p45
      %p48 = scmp.ne.s32.totalorder %s31, %s47
      %p49 = scmp.eq.s32.totalorder %s23, 0
      %p50 = por %p48, %p49
      %s52 = sadd.s32 %s51, 1
      %p55 = scmp.eq.s32.totalorder %s17, 1
      %p56 = scmp.ne.s32.totalorder %s51, %s53
      %p57 = scmp.eq.s32.totalorder %s17, 0
      %p58 = por %p56, %p57
      %p59 = scmp.ne.s32.totalorder %s51, %s53
      %p60 = scmp.eq.s32.totalorder %s22, 1
      %p61 = por %p59, %p60
      %p62 = scmp.ne.s32.totalorder %s53, %s54
      %p63 = scmp.eq.s32.totalorder %s22, 0
      %p64 = por %p62, %p63
      %p65 = scmp.ne.s32.totalorder %s53, %s54
      %p66 = scmp.eq.s32.totalorder %s23, 1
      %p67 = por %p65, %p66
      %p69 = scmp.ne.s32.totalorder %s54, %s68
      %p70 = scmp.eq.s32.totalorder %s23, 0
      %p71 = por %p69, %p70
      %s73 = sadd.s32 %s72, 1
      %p76 = scmp.eq.s32.totalorder %s17, 1
      %p77 = scmp.ne.s32.totalorder %s72, %s74
      %p78 = scmp.eq.s32.totalorder %s17, 0
      %p79 = por %p77, %p78
      %p80 = scmp.ne.s32.totalorder %s72, %s74
      %p81 = scmp.eq.s32.totalorder %s22, 1
      %p82 = por %p80, %p81
      %p83 = scmp.ne.s32.totalorder %s74, %s75
      %p84 = scmp.eq.s32.totalorder %s22, 0
      %p85 = por %p83, %p84
      %p86 = scmp.ne.s32.totalorder %s74, %s75
      %p87 = scmp.eq.s32.totalorder %s23, 1
      %p88 = por %p86, %p87
      %p90 = scmp.ne.s32.totalorder %s75, %s89
      %p91 = scmp.eq.s32.totalorder %s23, 0
      %p92 = por %p90, %p91
      %s94 = sadd.s32 %s93, 1
      %p97 = scmp.eq.s32.totalorder %s17, 1
      %p98 = scmp.ne.s32.totalorder %s93, %s95
      %p99 = scmp.eq.s32.totalorder %s17, 0
      %p100 = por %p98, %p99
      %p101 = scmp.ne.s32.totalorder %s93, %s95
      %p102 = scmp.eq.s32.totalorder %s22, 1
      %p103 = por %p101, %p102
      %p104 = scmp.ne.s32.totalorder %s95, %s96
      %p105 = scmp.eq.s32.totalorder %s22, 0
      %p106 = por %p104, %p105
      %p107 = scmp.ne.s32.totalorder %s95, %s96
      %p108 = scmp.eq.s32.totalorder %s23, 1
      %p109 = por %p107, %p108
      %p111 = scmp.ne.s32.totalorder %s96, %s110
      %p112 = scmp.eq.s32.totalorder %s23, 0
      %p113 = por %p111, %p112
      %s114 = ssub.s32 %s17, %s24
      %p115 = scmp.eq.s32.totalorder %s114, 0
      %s117 = sadd.s32 %s116, 1
      %s118 = scalar_select %p115, %s116, %s117
      %p121 = pneg %p115
      %p122 = scmp.eq.s32.totalorder %s17, 1
      %p123 = por %p121, %p122
      %p124 = scmp.ne.s32.totalorder %s116, %s119
      %p125 = scmp.eq.s32.totalorder %s17, 0
      %p126 = por %p124, %p125
      %p127 = scmp.ne.s32.totalorder %s116, %s119
      %p128 = scmp.eq.s32.totalorder %s22, 1
      %p129 = por %p127, %p128
      %p130 = scmp.ne.s32.totalorder %s119, %s120
      %p131 = scmp.eq.s32.totalorder %s22, 0
      %p132 = por %p130, %p131
      %p133 = scmp.ne.s32.totalorder %s119, %s120
      %p134 = scmp.eq.s32.totalorder %s23, 1
      %p135 = por %p133, %p134
      %p137 = scmp.ne.s32.totalorder %s120, %s136
      %p138 = scmp.eq.s32.totalorder %s23, 0
      %p139 = por %p137, %p138
      %p140 = scmp.le.s32.totalorder 1, %s17
      %p141 = scmp.lt.s32.totalorder %s17, 3
      %p142 = pnand %p140, %p141
      %p143 = pneg %p142
      // Predicated region
      $region9: #{tpu_custom_call.1} parent=5 // pred_check
        _
      $region10: #{tpu_custom_call.1} parent=5 // pred_check_branch
        %145 = sbr.rel (%p142) target = $region12
      $region11: #{tpu_custom_call.1} parent=5 // pred_region
        %s146 = ssub.s32 %s17, 1
        // Predicated region
        $region13: #{tpu_custom_call.1} parent=11 // pred_check
          %p147 = pneg %p64
        $region14: #{tpu_custom_call.1} parent=11 // pred_check_branch
          %149 = sbr.rel (%p147) target = $region16
        $region15: #{tpu_custom_call.1} parent=11 // pred_region
          %151 = vsyncadd [#allocation6], 0
          %s152 = sshll.u32 %s1, 4
          %s153 = int_to_ptr.hbm [resolvable:$true] %s152
          %s154 = sshll.u32 [#allocation5], 4
          %s155 = int_to_ptr.vmem [resolvable:$true] %s154
          %160 = dma.hbm_to_vmem [thread:$0]  %s153, 1024, %s155, [#allocation6], 128, 128, 8
        $region16: #{tpu_custom_call.1} parent=11 // pred_fallthru
          _
        // Predicated region
        $region17: #{tpu_custom_call.1} parent=11 // pred_check
          %p161 = pneg %p85
        $region18: #{tpu_custom_call.1} parent=11 // pred_check_branch
          %163 = sbr.rel (%p161) target = $region20
        $region19: #{tpu_custom_call.1} parent=11 // pred_region
          %165 = vsyncadd [#allocation6], 0
          %s166 = sshll.u32 %s2, 4
          %s167 = int_to_ptr.hbm [resolvable:$true] %s166
          %s168 = sshll.u32 [#allocation7], 4
          %s169 = int_to_ptr.vmem [resolvable:$true] %s168
          %174 = dma.hbm_to_vmem [thread:$0]  %s167, 1024, %s169, [#allocation6], 128, 128, 8
        $region20: #{tpu_custom_call.1} parent=11 // pred_fallthru
          _
        // Predicated region
        $region21: #{tpu_custom_call.1} parent=11 // pred_check
          %p175 = pneg %p106
        $region22: #{tpu_custom_call.1} parent=11 // pred_check_branch
          %177 = sbr.rel (%p175) target = $region24
        $region23: #{tpu_custom_call.1} parent=11 // pred_region
          _
        $region24: #{tpu_custom_call.1} parent=11 // pred_fallthru
          _
      $region12: #{tpu_custom_call.1} parent=5 // pred_fallthru
        _
      %p178 = scmp.lt.s32.totalorder %s17, 2
      // Predicated region
      $region25: #{tpu_custom_call.1} parent=5 // pred_check
        %p179 = pneg %p178
      $region26: #{tpu_custom_call.1} parent=5 // pred_check_branch
        %181 = sbr.rel (%p179) target = $region28
      $region27: #{tpu_custom_call.1} parent=5 // pred_region
        // Predicated region
        $region29: #{tpu_custom_call.1} parent=27 // pred_check
          %p182 = pneg %p37
        $region30: #{tpu_custom_call.1} parent=27 // pred_check_branch
          %184 = sbr.rel (%p182) target = $region32
        $region31: #{tpu_custom_call.1} parent=27 // pred_region
          %s185 = sand.u32 %s27, 1
          %s186 = scalar_lea.sflag [#allocation3], %s185
          %s187 = sand.u32 %s27, 1
          %s188 = smul.addr %s187, 128
          %s189 = scalar_lea.vmem [#allocation2], %s188
          %s190 = smul.u32 8, %s17
          %192 = vsyncadd %s186, 0
          %s193 = smul.addr %s190, 2
          %s194 = smul.addr %s193, 8
          %s195 = scalar_lea.hbm %s0, %s194
          %s196 = sshll.u32 %s195, 4
          %s197 = int_to_ptr.hbm [resolvable:$true] %s196
          %s198 = sshll.u32 %s189, 4
          %s199 = int_to_ptr.vmem [resolvable:$true] %s198
          %204 = dma.hbm_to_vmem [thread:$0]  %s197, 2048, %s199, %s186, 128, 128, 8
        $region32: #{tpu_custom_call.1} parent=27 // pred_fallthru
          _
      $region28: #{tpu_custom_call.1} parent=5 // pred_fallthru
        _
      %p205 = scmp.le.s32.totalorder 1, %s17
      %p206 = scmp.lt.s32.totalorder %s17, 3
      %p207 = pnand %p205, %p206
      %p208 = pneg %p207
      // Predicated region
      $region33: #{tpu_custom_call.1} parent=5 // pred_check
        _
      $region34: #{tpu_custom_call.1} parent=5 // pred_check_branch
        %210 = sbr.rel (%p207) target = $region36
      $region35: #{tpu_custom_call.1} parent=5 // pred_region
        %s211 = ssub.s32 %s17, 1
        %s212 = sand.u32 %s30, 1
        %s213 = scalar_lea.sflag [#allocation3], %s212
        %s214 = sand.u32 %s30, 1
        %s215 = smul.addr %s214, 128
        %s216 = scalar_lea.vmem [#allocation2], %s215
        // Predicated region
        $region37: #{tpu_custom_call.1} parent=35 // pred_check
          %p217 = pneg %p43
        $region38: #{tpu_custom_call.1} parent=35 // pred_check_branch
          %219 = sbr.rel (%p217) target = $region40
        $region39: #{tpu_custom_call.1} parent=35 // pred_region
          %221 = dma.done %s213, 2048
        $region40: #{tpu_custom_call.1} parent=35 // pred_fallthru
          _
        // Predicated region
        $region41: #{tpu_custom_call.1} parent=35 // pred_check
          %p222 = pneg %p64
        $region42: #{tpu_custom_call.1} parent=35 // pred_check_branch
          %224 = sbr.rel (%p222) target = $region44
        $region43: #{tpu_custom_call.1} parent=35 // pred_region
          %226 = dma.done [#allocation6], 1024
        $region44: #{tpu_custom_call.1} parent=35 // pred_fallthru
          _
        // Predicated region
        $region45: #{tpu_custom_call.1} parent=35 // pred_check
          %p227 = pneg %p85
        $region46: #{tpu_custom_call.1} parent=35 // pred_check_branch
          %229 = sbr.rel (%p227) target = $region48
        $region47: #{tpu_custom_call.1} parent=35 // pred_region
          %231 = dma.done [#allocation6], 1024
        $region48: #{tpu_custom_call.1} parent=35 // pred_fallthru
          _
        %s232 = sand.u32 %s30, 1
        %s233 = scalar_lea.sflag [#allocation3], %s232
        %s234 = sand.u32 %s30, 1
        %s235 = smul.addr %s234, 128
        %s236 = scalar_lea.vmem [#allocation2], %s235
        %p237 = pneg %p43
        %p238 = pneg %p40
        %p239 = pneg %p64
        %p240 = pneg %p61
        %p241 = pneg %p85
        %p242 = pneg %p82
        %p243 = pneg %p106
        %p244 = pneg %p103
        %p245 = pneg %p132
        %p246 = pneg %p129
        %s247 = sand.u32 %s119, 1
        %s248 = scalar_lea.sflag [#allocation4], %s247
        %s249 = sand.u32 %s119, 1
        %s250 = smul.addr %s249, 64
        %s251 = scalar_lea.vmem [#allocation8], %s250
        %s252 = smul.u32 8, %s22
        %s253 = smul.u32 8, %s22
        %v254 = vld [vmem:[%s216] sm:$0xff]
        %v255 = vld [vmem:[%s216 + $0x8] sm:$0xff]
        %v256 = vld [vmem:[%s216 + $0x10] sm:$0xff]
        %v257 = vld [vmem:[%s216 + $0x18] sm:$0xff]
        %v258 = vld [vmem:[%s216 + $0x20] sm:$0xff]
        %v259 = vld [vmem:[%s216 + $0x28] sm:$0xff]
        %v260 = vld [vmem:[%s216 + $0x30] sm:$0xff]
        %v261 = vld [vmem:[%s216 + $0x38] sm:$0xff]
        %v262 = vld [vmem:[%s216 + $0x40] sm:$0xff]
        %v263 = vld [vmem:[%s216 + $0x48] sm:$0xff]
        %v264 = vld [vmem:[%s216 + $0x50] sm:$0xff]
        %v265 = vld [vmem:[%s216 + $0x58] sm:$0xff]
        %v266 = vld [vmem:[%s216 + $0x60] sm:$0xff]
        %v267 = vld [vmem:[%s216 + $0x68] sm:$0xff]
        %v268 = vld [vmem:[%s216 + $0x70] sm:$0xff]
        %v269 = vld [vmem:[%s216 + $0x78] sm:$0xff]
        %vm270 = vcmask 523264
        %v271 = vsel %vm270, %v254, 0.0
        %272 = vadd.xlane.f32.xlu0 %v271
        %v273 = vpop.xlane.xlu0 %272
        %v274 = vsel %vm270, %v256, 0.0
        %275 = vadd.xlane.f32.xlu0 %v274
        %v276 = vpop.xlane.xlu0 %275
        %v277 = vsel %vm270, %v258, 0.0
        %278 = vadd.xlane.f32.xlu0 %v277
        %v279 = vpop.xlane.xlu0 %278
        %v280 = vsel %vm270, %v260, 0.0
        %281 = vadd.xlane.f32.xlu0 %v280
        %v282 = vpop.xlane.xlu0 %281
        %v283 = vsel %vm270, %v262, 0.0
        %284 = vadd.xlane.f32.xlu0 %v283
        %v285 = vpop.xlane.xlu0 %284
        %v286 = vsel %vm270, %v264, 0.0
        %287 = vadd.xlane.f32.xlu0 %v286
        %v288 = vpop.xlane.xlu0 %287
        %v289 = vsel %vm270, %v266, 0.0
        %290 = vadd.xlane.f32.xlu0 %v289
        %v291 = vpop.xlane.xlu0 %290
        %v292 = vsel %vm270, %v268, 0.0
        %293 = vadd.xlane.f32.xlu0 %v292
        %v294 = vpop.xlane.xlu0 %293
        %v295 = vsel %vm270, %v255, 0.0
        %296 = vadd.xlane.f32.xlu0 %v295
        %v297 = vpop.xlane.xlu0 %296
        %v298 = vsel %vm270, %v257, 0.0
        %299 = vadd.xlane.f32.xlu0 %v298
        %v300 = vpop.xlane.xlu0 %299
        %v301 = vsel %vm270, %v259, 0.0
        %302 = vadd.xlane.f32.xlu0 %v301
        %v303 = vpop.xlane.xlu0 %302
        %v304 = vsel %vm270, %v261, 0.0
        %305 = vadd.xlane.f32.xlu0 %v304
        %v306 = vpop.xlane.xlu0 %305
        %v307 = vsel %vm270, %v263, 0.0
        %308 = vadd.xlane.f32.xlu0 %v307
        %v309 = vpop.xlane.xlu0 %308
        %v310 = vsel %vm270, %v265, 0.0
        %311 = vadd.xlane.f32.xlu0 %v310
        %v312 = vpop.xlane.xlu0 %311
        %v313 = vsel %vm270, %v267, 0.0
        %314 = vadd.xlane.f32.xlu0 %v313
        %v315 = vpop.xlane.xlu0 %314
        %v316 = vsel %vm270, %v269, 0.0
        %317 = vadd.xlane.f32.xlu0 %v316
        %v318 = vpop.xlane.xlu0 %317
        %v319 = vadd.f32 %v273, %v297
        %v320 = vadd.f32 %v276, %v300
        %v321 = vadd.f32 %v279, %v303
        %v322 = vadd.f32 %v282, %v306
        %v323 = vadd.f32 %v285, %v309
        %v324 = vadd.f32 %v288, %v312
        %v325 = vadd.f32 %v291, %v315
        %v326 = vadd.f32 %v294, %v318
        %v327 = vmul.f32 %v254, %v254
        %v328 = vmul.f32 %v256, %v256
        %v329 = vmul.f32 %v258, %v258
        %v330 = vmul.f32 %v260, %v260
        %v331 = vmul.f32 %v262, %v262
        %v332 = vmul.f32 %v264, %v264
        %v333 = vmul.f32 %v266, %v266
        %v334 = vmul.f32 %v268, %v268
        %v335 = vsel %vm270, %v327, 0.0
        %336 = vadd.xlane.f32.xlu0 %v335
        %v337 = vpop.xlane.xlu0 %336
        %v338 = vsel %vm270, %v328, 0.0
        %339 = vadd.xlane.f32.xlu0 %v338
        %v340 = vpop.xlane.xlu0 %339
        %v341 = vsel %vm270, %v329, 0.0
        %342 = vadd.xlane.f32.xlu0 %v341
        %v343 = vpop.xlane.xlu0 %342
        %v344 = vsel %vm270, %v330, 0.0
        %345 = vadd.xlane.f32.xlu0 %v344
        %v346 = vpop.xlane.xlu0 %345
        %v347 = vsel %vm270, %v331, 0.0
        %348 = vadd.xlane.f32.xlu0 %v347
        %v349 = vpop.xlane.xlu0 %348
        %v350 = vsel %vm270, %v332, 0.0
        %351 = vadd.xlane.f32.xlu0 %v350
        %v352 = vpop.xlane.xlu0 %351
        %v353 = vsel %vm270, %v333, 0.0
        %354 = vadd.xlane.f32.xlu0 %v353
        %v355 = vpop.xlane.xlu0 %354
        %v356 = vsel %vm270, %v334, 0.0
        %357 = vadd.xlane.f32.xlu0 %v356
        %v358 = vpop.xlane.xlu0 %357
        %v359 = vmul.f32 %v255, %v255
        %v360 = vmul.f32 %v257, %v257
        %v361 = vmul.f32 %v259, %v259
        %v362 = vmul.f32 %v261, %v261
        %v363 = vmul.f32 %v263, %v263
        %v364 = vmul.f32 %v265, %v265
        %v365 = vmul.f32 %v267, %v267
        %v366 = vmul.f32 %v269, %v269
        %v367 = vsel %vm270, %v359, 0.0
        %368 = vadd.xlane.f32.xlu0 %v367
        %v369 = vpop.xlane.xlu0 %368
        %v370 = vsel %vm270, %v360, 0.0
        %371 = vadd.xlane.f32.xlu0 %v370
        %v372 = vpop.xlane.xlu0 %371
        %v373 = vsel %vm270, %v361, 0.0
        %374 = vadd.xlane.f32.xlu0 %v373
        %v375 = vpop.xlane.xlu0 %374
        %v376 = vsel %vm270, %v362, 0.0
        %377 = vadd.xlane.f32.xlu0 %v376
        %v378 = vpop.xlane.xlu0 %377
        %v379 = vsel %vm270, %v363, 0.0
        %380 = vadd.xlane.f32.xlu0 %v379
        %v381 = vpop.xlane.xlu0 %380
        %v382 = vsel %vm270, %v364, 0.0
        %383 = vadd.xlane.f32.xlu0 %v382
        %v384 = vpop.xlane.xlu0 %383
        %v385 = vsel %vm270, %v365, 0.0
        %386 = vadd.xlane.f32.xlu0 %v385
        %v387 = vpop.xlane.xlu0 %386
        %v388 = vsel %vm270, %v366, 0.0
        %389 = vadd.xlane.f32.xlu0 %v388
        %v390 = vpop.xlane.xlu0 %389
        %v391 = vadd.f32 %v337, %v369
        %v392 = vadd.f32 %v340, %v372
        %v393 = vadd.f32 %v343, %v375
        %v394 = vadd.f32 %v346, %v378
        %v395 = vadd.f32 %v349, %v381
        %v396 = vadd.f32 %v352, %v384
        %v397 = vadd.f32 %v355, %v387
        %v398 = vadd.f32 %v358, %v390
        %v399 = vmul.f32 %v319, 0.0078125
        %v400 = vmul.f32 %v320, 0.0078125
        %v401 = vmul.f32 %v321, 0.0078125
        %v402 = vmul.f32 %v322, 0.0078125
        %v403 = vmul.f32 %v323, 0.0078125
        %v404 = vmul.f32 %v324, 0.0078125
        %v405 = vmul.f32 %v325, 0.0078125
        %v406 = vmul.f32 %v326, 0.0078125
        %v407 = vmul.f32 %v391, 0.0078125
        %v408 = vmul.f32 %v392, 0.0078125
        %v409 = vmul.f32 %v393, 0.0078125
        %v410 = vmul.f32 %v394, 0.0078125
        %v411 = vmul.f32 %v395, 0.0078125
        %v412 = vmul.f32 %v396, 0.0078125
        %v413 = vmul.f32 %v397, 0.0078125
        %v414 = vmul.f32 %v398, 0.0078125
        %v415 = vmul.f32 %v399, %v399
        %v416 = vmul.f32 %v400, %v400
        %v417 = vmul.f32 %v401, %v401
        %v418 = vmul.f32 %v402, %v402
        %v419 = vmul.f32 %v403, %v403
        %v420 = vmul.f32 %v404, %v404
        %v421 = vmul.f32 %v405, %v405
        %v422 = vmul.f32 %v406, %v406
        %v423 = vsub.f32 %v407, %v415
        %v424 = vsub.f32 %v408, %v416
        %v425 = vsub.f32 %v409, %v417
        %v426 = vsub.f32 %v410, %v418
        %v427 = vsub.f32 %v411, %v419
        %v428 = vsub.f32 %v412, %v420
        %v429 = vsub.f32 %v413, %v421
        %v430 = vsub.f32 %v414, %v422
        %v431 = vmax.f32 %v423, 0.0
        %v432 = vmax.f32 %v424, 0.0
        %v433 = vmax.f32 %v425, 0.0
        %v434 = vmax.f32 %v426, 0.0
        %v435 = vmax.f32 %v427, 0.0
        %v436 = vmax.f32 %v428, 0.0
        %v437 = vmax.f32 %v429, 0.0
        %v438 = vmax.f32 %v430, 0.0
        %v439 = vadd.f32 %v431, 1e-05
        %v440 = vadd.f32 %v432, 1e-05
        %v441 = vadd.f32 %v433, 1e-05
        %v442 = vadd.f32 %v434, 1e-05
        %v443 = vadd.f32 %v435, 1e-05
        %v444 = vadd.f32 %v436, 1e-05
        %v445 = vadd.f32 %v437, 1e-05
        %v446 = vadd.f32 %v438, 1e-05
        %v447 = vrsqrt.pop %v439
        %v448 = vmul.f32 %v447, %v439
        %v449 = vmul.f32 %v448, %v447
        %v450 = vmul.f32 0.5, %v449
        %v451 = vsub.f32 1.5, %v450
        %v452 = vmul.f32 %v447, %v451
        %vm453 = vweird.f32 %v439
        %vm454 = vweird.f32 %v447
        %vm455 = vmor %vm453, %vm454
        %v456 = vsel %vm455, %v447, %v452
        %v457 = vrsqrt.pop %v440
        %v458 = vmul.f32 %v457, %v440
        %v459 = vmul.f32 %v458, %v457
        %v460 = vmul.f32 0.5, %v459
        %v461 = vsub.f32 1.5, %v460
        %v462 = vmul.f32 %v457, %v461
        %vm463 = vweird.f32 %v440
        %vm464 = vweird.f32 %v457
        %vm465 = vmor %vm463, %vm464
        %v466 = vsel %vm465, %v457, %v462
        %v467 = vrsqrt.pop %v441
        %v468 = vmul.f32 %v467, %v441
        %v469 = vmul.f32 %v468, %v467
        %v470 = vmul.f32 0.5, %v469
        %v471 = vsub.f32 1.5, %v470
        %v472 = vmul.f32 %v467, %v471
        %vm473 = vweird.f32 %v441
        %vm474 = vweird.f32 %v467
        %vm475 = vmor %vm473, %vm474
        %v476 = vsel %vm475, %v467, %v472
        %v477 = vrsqrt.pop %v442
        %v478 = vmul.f32 %v477, %v442
        %v479 = vmul.f32 %v478, %v477
        %v480 = vmul.f32 0.5, %v479
        %v481 = vsub.f32 1.5, %v480
        %v482 = vmul.f32 %v477, %v481
        %vm483 = vweird.f32 %v442
        %vm484 = vweird.f32 %v477
        %vm485 = vmor %vm483, %vm484
        %v486 = vsel %vm485, %v477, %v482
        %v487 = vrsqrt.pop %v443
        %v488 = vmul.f32 %v487, %v443
        %v489 = vmul.f32 %v488, %v487
        %v490 = vmul.f32 0.5, %v489
        %v491 = vsub.f32 1.5, %v490
        %v492 = vmul.f32 %v487, %v491
        %vm493 = vweird.f32 %v443
        %vm494 = vweird.f32 %v487
        %vm495 = vmor %vm493, %vm494
        %v496 = vsel %vm495, %v487, %v492
        %v497 = vrsqrt.pop %v444
        %v498 = vmul.f32 %v497, %v444
        %v499 = vmul.f32 %v498, %v497
        %v500 = vmul.f32 0.5, %v499
        %v501 = vsub.f32 1.5, %v500
        %v502 = vmul.f32 %v497, %v501
        %vm503 = vweird.f32 %v444
        %vm504 = vweird.f32 %v497
        %vm505 = vmor %vm503, %vm504
        %v506 = vsel %vm505, %v497, %v502
        %v507 = vrsqrt.pop %v445
        %v508 = vmul.f32 %v507, %v445
        %v509 = vmul.f32 %v508, %v507
        %v510 = vmul.f32 0.5, %v509
        %v511 = vsub.f32 1.5, %v510
        %v512 = vmul.f32 %v507, %v511
        %vm513 = vweird.f32 %v445
        %vm514 = vweird.f32 %v507
        %vm515 = vmor %vm513, %vm514
        %v516 = vsel %vm515, %v507, %v512
        %v517 = vrsqrt.pop %v446
        %v518 = vmul.f32 %v517, %v446
        %v519 = vmul.f32 %v518, %v517
        %v520 = vmul.f32 0.5, %v519
        %v521 = vsub.f32 1.5, %v520
        %v522 = vmul.f32 %v517, %v521
        %vm523 = vweird.f32 %v446
        %vm524 = vweird.f32 %v517
        %vm525 = vmor %vm523, %vm524
        %v526 = vsel %vm525, %v517, %v522
        %v527 = vsub.f32 %v254, %v399
        %v528 = vsub.f32 %v256, %v400
        %v529 = vsub.f32 %v258, %v401
        %v530 = vsub.f32 %v260, %v402
        %v531 = vsub.f32 %v262, %v403
        %v532 = vsub.f32 %v264, %v404
        %v533 = vsub.f32 %v266, %v405
        %v534 = vsub.f32 %v268, %v406
        %v535 = vmul.f32 %v527, %v456
        %v536 = vmul.f32 %v528, %v466
        %v537 = vmul.f32 %v529, %v476
        %v538 = vmul.f32 %v530, %v486
        %v539 = vmul.f32 %v531, %v496
        %v540 = vmul.f32 %v532, %v506
        %v541 = vmul.f32 %v533, %v516
        %v542 = vmul.f32 %v534, %v526
        %v543 = vsub.f32 %v255, %v399
        %v544 = vsub.f32 %v257, %v400
        %v545 = vsub.f32 %v259, %v401
        %v546 = vsub.f32 %v261, %v402
        %v547 = vsub.f32 %v263, %v403
        %v548 = vsub.f32 %v265, %v404
        %v549 = vsub.f32 %v267, %v405
        %v550 = vsub.f32 %v269, %v406
        %v551 = vmul.f32 %v543, %v456
        %v552 = vmul.f32 %v544, %v466
        %v553 = vmul.f32 %v545, %v476
        %v554 = vmul.f32 %v546, %v486
        %v555 = vmul.f32 %v547, %v496
        %v556 = vmul.f32 %v548, %v506
        %v557 = vmul.f32 %v549, %v516
        %v558 = vmul.f32 %v550, %v526
        %v559 = vld [vmem:[#allocation5] sm:$0xff]
        %v560 = vld [vmem:[#allocation5 + $0x8] sm:$0xff]
        %v561 = vld [vmem:[#allocation5 + $0x10] sm:$0xff]
        %v562 = vld [vmem:[#allocation5 + $0x18] sm:$0xff]
        %v563 = vld [vmem:[#allocation5 + $0x20] sm:$0xff]
        %v564 = vld [vmem:[#allocation5 + $0x28] sm:$0xff]
        %v565 = vld [vmem:[#allocation5 + $0x30] sm:$0xff]
        %v566 = vld [vmem:[#allocation5 + $0x38] sm:$0xff]
        %v567 = vld [vmem:[#allocation7] sm:$0xff]
        %v568 = vld [vmem:[#allocation7 + $0x8] sm:$0xff]
        %v569 = vld [vmem:[#allocation7 + $0x10] sm:$0xff]
        %v570 = vld [vmem:[#allocation7 + $0x18] sm:$0xff]
        %v571 = vld [vmem:[#allocation7 + $0x20] sm:$0xff]
        %v572 = vld [vmem:[#allocation7 + $0x28] sm:$0xff]
        %v573 = vld [vmem:[#allocation7 + $0x30] sm:$0xff]
        %v574 = vld [vmem:[#allocation7 + $0x38] sm:$0xff]
        %v576 = vsel %vm270, %v551, 0
        %v579 = vsel %vm270, %v552, 0
        %v582 = vsel %vm270, %v553, 0
        %v585 = vsel %vm270, %v554, 0
        %v588 = vsel %vm270, %v555, 0
        %v591 = vsel %vm270, %v556, 0
        %v594 = vsel %vm270, %v557, 0
        %v597 = vsel %vm270, %v558, 0
        %599 = vmatpush.msra.mxu0 0.0
        %600 = vmatpush.msra.mxu0 0.0
        %601 = vmatpush.msra.mxu0 0.0
        %602 = vmatpush.msra.mxu0 0.0
        %603 = vmatpush.msra.mxu0 0.0
        %604 = vmatpush.msra.mxu0 0.0
        %605 = vmatpush.msra.mxu0 0.0
        %606 = vmatpush.msra.mxu0 0.0
        %607 = vmatpush.msra.mxu0 %v574
        %608 = vmatpush.msra.mxu0 %v573
        %609 = vmatpush.msra.mxu0 %v572
        %610 = vmatpush.msra.mxu0 %v571
        %611 = vmatpush.msra.mxu0 %v570
        %612 = vmatpush.msra.mxu0 %v569
        %613 = vmatpush.msra.mxu0 %v568
        %614 = vmatpush.msra.mxu0 %v567
        %615 = vmatmul.f32.gmra.mxu0 %v576
        %v616 = vpop.f32.mrf.mxu0
        %v617 = vadd.f32 0.0, %v616
        %618 = vmatmul.f32.gmra.mxu0 %v579
        %v619 = vpop.f32.mrf.mxu0
        %v620 = vadd.f32 0.0, %v619
        %621 = vmatmul.f32.gmra.mxu0 %v582
        %v622 = vpop.f32.mrf.mxu0
        %v623 = vadd.f32 0.0, %v622
        %624 = vmatmul.f32.gmra.mxu0 %v585
        %v625 = vpop.f32.mrf.mxu0
        %v626 = vadd.f32 0.0, %v625
        %627 = vmatmul.f32.gmra.mxu0 %v588
        %v628 = vpop.f32.mrf.mxu0
        %v629 = vadd.f32 0.0, %v628
        %630 = vmatmul.f32.gmra.mxu0 %v591
        %v631 = vpop.f32.mrf.mxu0
        %v632 = vadd.f32 0.0, %v631
        %633 = vmatmul.f32.gmra.mxu0 %v594
        %v634 = vpop.f32.mrf.mxu0
        %v635 = vadd.f32 0.0, %v634
        %636 = vmatmul.f32.gmra.mxu0 %v597
        %v637 = vpop.f32.mrf.mxu0
        %v638 = vadd.f32 0.0, %v637
        %639 = vdwg.mxu0
        %v641 = vsel %vm270, %v535, 0
        %v644 = vsel %vm270, %v536, 0
        %v647 = vsel %vm270, %v537, 0
        %v650 = vsel %vm270, %v538, 0
        %v653 = vsel %vm270, %v539, 0
        %v656 = vsel %vm270, %v540, 0
        %v659 = vsel %vm270, %v541, 0
        %v662 = vsel %vm270, %v542, 0
        %664 = vmatpush.msra.mxu0 0.0
        %665 = vmatpush.msra.mxu0 0.0
        %666 = vmatpush.msra.mxu0 0.0
        %667 = vmatpush.msra.mxu0 0.0
        %668 = vmatpush.msra.mxu0 0.0
        %669 = vmatpush.msra.mxu0 0.0
        %670 = vmatpush.msra.mxu0 0.0
        %671 = vmatpush.msra.mxu0 0.0
        %672 = vmatpush.msra.mxu0 %v566
        %673 = vmatpush.msra.mxu0 %v565
        %674 = vmatpush.msra.mxu0 %v564
        %675 = vmatpush.msra.mxu0 %v563
        %676 = vmatpush.msra.mxu0 %v562
        %677 = vmatpush.msra.mxu0 %v561
        %678 = vmatpush.msra.mxu0 %v560
        %679 = vmatpush.msra.mxu0 %v559
        %680 = vmatmul.f32.gmra.mxu0 %v641
        %v681 = vpop.f32.mrf.mxu0
        %v682 = vadd.f32 %v617, %v681
        %683 = vmatmul.f32.gmra.mxu0 %v644
        %v684 = vpop.f32.mrf.mxu0
        %v685 = vadd.f32 %v620, %v684
        %686 = vmatmul.f32.gmra.mxu0 %v647
        %v687 = vpop.f32.mrf.mxu0
        %v688 = vadd.f32 %v623, %v687
        %689 = vmatmul.f32.gmra.mxu0 %v650
        %v690 = vpop.f32.mrf.mxu0
        %v691 = vadd.f32 %v626, %v690
        %692 = vmatmul.f32.gmra.mxu0 %v653
        %v693 = vpop.f32.mrf.mxu0
        %v694 = vadd.f32 %v629, %v693
        %695 = vmatmul.f32.gmra.mxu0 %v656
        %v696 = vpop.f32.mrf.mxu0
        %v697 = vadd.f32 %v632, %v696
        %698 = vmatmul.f32.gmra.mxu0 %v659
        %v699 = vpop.f32.mrf.mxu0
        %v700 = vadd.f32 %v635, %v699
        %701 = vmatmul.f32.gmra.mxu0 %v662
        %v702 = vpop.f32.mrf.mxu0
        %v703 = vadd.f32 %v638, %v702
        %704 = vdwg.mxu0
        %v705 = vld [vmem:[%s3] sm:$0x1]
        %v707 = vperm.slane %v705, 0
        %v709 = vadd.f32 %v682, %v707
        %v710 = vadd.f32 %v685, %v707
        %v711 = vadd.f32 %v688, %v707
        %v712 = vadd.f32 %v691, %v707
        %v713 = vadd.f32 %v694, %v707
        %v714 = vadd.f32 %v697, %v707
        %v715 = vadd.f32 %v700, %v707
        %v716 = vadd.f32 %v703, %v707
        %717 = vst.msk [vmem:[%s251] sm:$0xff] %vm270, %v709
        %718 = vst.msk [vmem:[%s251 + $0x8] sm:$0xff] %vm270, %v710
        %719 = vst.msk [vmem:[%s251 + $0x10] sm:$0xff] %vm270, %v711
        %720 = vst.msk [vmem:[%s251 + $0x18] sm:$0xff] %vm270, %v712
        %721 = vst.msk [vmem:[%s251 + $0x20] sm:$0xff] %vm270, %v713
        %722 = vst.msk [vmem:[%s251 + $0x28] sm:$0xff] %vm270, %v714
        %723 = vst.msk [vmem:[%s251 + $0x30] sm:$0xff] %vm270, %v715
        %724 = vst.msk [vmem:[%s251 + $0x38] sm:$0xff] %vm270, %v716
        %s725 = sand.u32 %s119, 1
        %s726 = scalar_lea.sflag [#allocation4], %s725
        %s727 = sand.u32 %s119, 1
        %s728 = smul.addr %s727, 64
        %s729 = scalar_lea.vmem [#allocation8], %s728
        // Predicated region
        $region49: #{tpu_custom_call.1} parent=35 // pred_check
          %p730 = pneg %p129
        $region50: #{tpu_custom_call.1} parent=35 // pred_check_branch
          %732 = sbr.rel (%p730) target = $region52
        $region51: #{tpu_custom_call.1} parent=35 // pred_region
          %s733 = smul.u32 8, %s22
          %735 = vsyncadd %s726, 0
          %s736 = smul.addr %s733, 8
          %s737 = scalar_lea.hbm %s4, %s736
          %s738 = sshll.u32 %s729, 4
          %s739 = int_to_ptr.vmem [resolvable:$true] %s738
          %s740 = sshll.u32 %s737, 4
          %s741 = int_to_ptr.hbm [resolvable:$true] %s740
          %746 = dma.vmem_to_hbm [thread:$0]  %s739, 1024, %s741, %s726, 128, 128, 8
        $region52: #{tpu_custom_call.1} parent=35 // pred_fallthru
          _
      $region36: #{tpu_custom_call.1} parent=5 // pred_fallthru
        _
      %p747 = scmp.le.s32.totalorder 2, %s17
      // Predicated region
      $region53: #{tpu_custom_call.1} parent=5 // pred_check
        %p748 = pneg %p747
      $region54: #{tpu_custom_call.1} parent=5 // pred_check_branch
        %750 = sbr.rel (%p748) target = $region56
      $region55: #{tpu_custom_call.1} parent=5 // pred_region
        %s751 = ssub.s32 %s17, 2
        // Predicated region
        $region57: #{tpu_custom_call.1} parent=55 // pred_check
          %p752 = pneg %p135
        $region58: #{tpu_custom_call.1} parent=55 // pred_check_branch
          %754 = sbr.rel (%p752) target = $region60
        $region59: #{tpu_custom_call.1} parent=55 // pred_region
          %s755 = sand.u32 %s120, 1
          %s756 = scalar_lea.sflag [#allocation4], %s755
          %s757 = sand.u32 %s120, 1
          %s758 = smul.addr %s757, 64
          %s759 = scalar_lea.vmem [#allocation8], %s758
          %761 = dma.done %s756, 1024
        $region60: #{tpu_custom_call.1} parent=55 // pred_fallthru
          _
      $region56: #{tpu_custom_call.1} parent=5 // pred_fallthru
        _
    $region6: #{tpu_custom_call.1} parent=1 // loop_footer
      %s21 = sadd.s32 1, %s17
    $region7: #{tpu_custom_call.1} parent=1 // loop_footer_branch
      %16 = sbr.rel target = $region3
    $region8: #{tpu_custom_call.1} parent=1 // loop_exit
      _
    %762 = vsyncpa [#allocation3], 1
    %s763 = scalar_lea.sflag [#allocation3], 1
    %764 = vsyncpa %s763, 1
    %765 = vsyncpa [#allocation6], 1
    %766 = vsyncpa [#allocation4], 1
    %s767 = scalar_lea.sflag [#allocation4], 1
    %768 = vsyncpa %s767, 1

</llo_original>
